<compile_context>
chip_gen: v7x
topology: tpu7x:2x2x1
jax: 0.10.0
libtpu: 0.0.40
codegen_flags: <defaults>
</compile_context>

<pallas_src>
import functools

import jax
import jax.numpy as jnp
from jax.experimental import pallas as pl
from jax.experimental.pallas import tpu as pltpu


def _fused_mlp_kernel(x_ref,
                      w1_ref, b1_ref,
                      w2_ref, b2_ref,
                      w3_ref, b3_ref,
                      w4_ref, b4_ref,
                      w5_ref, b5_ref,
                      o_ref):
    """One batch tile: run all 5 Linear+ReLU layers with activations on-chip."""
    h = x_ref[...].astype(jnp.float32)
    for w_ref, b_ref in ((w1_ref, b1_ref), (w2_ref, b2_ref), (w3_ref, b3_ref),
                         (w4_ref, b4_ref), (w5_ref, b5_ref)):
        # Full-K, full-N matmul for this layer -> no accumulator scratch needed.
        h = jnp.dot(h, w_ref[...], preferred_element_type=jnp.float32)
        h = jnp.maximum(h + b_ref[...], 0.0)      # bias broadcast over rows
    o_ref[...] = h.astype(o_ref.dtype)


def _pick_tm(m):
    """Largest batch tile <= 256 that divides M and is a multiple of 8."""
    if m % 8 != 0:
        return m            # full extent (small / ragged batch)
    for t in (256, 128, 64, 32, 16, 8):
        if t <= m and m % t == 0:
            return t
    return m


def _vmem_bytes_estimate(dims, tm, itemsize=4):
    """Rough per-grid-step VMEM footprint (inputs/outputs double-buffered)."""
    w_bytes = sum(dims[i] * dims[i + 1] for i in range(5)) * itemsize
    b_bytes = sum(dims[1:]) * itemsize
    io_bytes = (tm * dims[0] + tm * dims[-1]) * itemsize
    inter_bytes = 2 * tm * max(dims) * itemsize   # live intermediate activations
    return 2 * (w_bytes + b_bytes + io_bytes) + inter_bytes


def mlp_forward_fused(x, params):
    """relu-chained 5-layer MLP, one fused Pallas kernel.

    x: (M, D0) float32
    params: list of 5 (w, b) pairs; w: (D_in, D_out), b: (D_out,)
    """
    M, D0 = x.shape
    dims = [D0] + [w.shape[1] for w, _ in params]
    for li, (w, b) in enumerate(params):
        assert w.shape == (dims[li], dims[li + 1]), (li, w.shape)
        assert b.shape == (dims[li + 1],), (li, b.shape)

    tm = _pick_tm(M)
    grid = (M // tm,)

    # Interleave w/b inputs; biases as (1, N) so the block is lane-aligned.
    flat_inputs = [x]
    in_specs = [pl.BlockSpec((tm, D0), lambda i: (i, 0))]
    for li, (w, b) in enumerate(params):
        d_in, d_out = dims[li], dims[li + 1]
        flat_inputs.append(w)
        in_specs.append(pl.BlockSpec((d_in, d_out), lambda i: (0, 0)))
        flat_inputs.append(b.reshape(1, d_out))
        in_specs.append(pl.BlockSpec((1, d_out), lambda i: (0, 0)))

    out_spec = pl.BlockSpec((tm, dims[-1]), lambda i: (i, 0))

    # Raise the scoped VMEM limit only if the estimate needs it; cap so the
    # plan still fits v7x's 64 MiB physical VMEM.
    est = _vmem_bytes_estimate(dims, tm)
    vmem_limit = None
    if est > (16 << 20):
        vmem_limit = min(est + (4 << 20), 60 << 20)

    return pl.pallas_call(
        _fused_mlp_kernel,
        out_shape=jax.ShapeDtypeStruct((M, dims[-1]), x.dtype),
        grid_spec=pltpu.PrefetchScalarGridSpec(
            num_scalar_prefetch=0,
            grid=grid,
            in_specs=in_specs,
            out_specs=out_spec,
        ),
        compiler_params=pltpu.CompilerParams(
            dimension_semantics=("parallel",),
            vmem_limit_bytes=vmem_limit,
        ),
    )(*flat_inputs)


def init_mlp_params(key, input_size):
    """Deterministic parameter init matching the MLP layer shapes.

    Layer widths: in -> 4*in -> 8*in -> 16*in -> 8*in -> 2*in
    Weights stored as (in_features, out_features).
    """
    dims = [
        input_size,
        input_size * 4,
        input_size * 8,
        input_size * 16,
        input_size * 8,
        input_size * 2,
    ]
    params = []
    for li in range(5):
        fan_in, fan_out = dims[li], dims[li + 1]
        key, kw, kb = jax.random.split(key, 3)
        bound = 1.0 / jnp.sqrt(fan_in)
        w = jax.random.uniform(
            kw, (fan_in, fan_out), jnp.float32, minval=-bound, maxval=bound
        )
        b = jax.random.uniform(
            kb, (fan_out,), jnp.float32, minval=-bound, maxval=bound
        )
        params.append((w, b))
    return params


@jax.jit
def mlp_forward(x, params):
    # x1..x5 = relu(l_i(prev)); return x5 (dropout / softmax are no-ops in the
    # reference forward).  Single fused Pallas kernel.
    return mlp_forward_fused(x, params)


def mlp_reference(x, params):
    h = x
    for w, b in params:
        h = jnp.maximum(h @ w + b, 0.0)
    return h


if __name__ == "__main__":
    # Small, MLP-consistent shapes: batch=8, input_size=32
    batch = 8
    input_size = 32

    key = jax.random.PRNGKey(0)
    key, kx = jax.random.split(key)
    x = jax.random.normal(kx, (batch, input_size), jnp.float32)

    params = init_mlp_params(jax.random.PRNGKey(0), input_size)

    out = mlp_forward(x, params)
    out = jax.block_until_ready(out)

    ref = mlp_reference(x, params)
    assert out.shape == (batch, input_size * 2), out.shape
    assert jnp.allclose(out, ref, atol=1e-4, rtol=1e-4), "mismatch vs reference"

    print("KERNEL_OK")
</pallas_src>

<mosaic_0001>
module attributes {stable_mosaic.version = 11 : i64} {
  func.func @_fused_mlp_kernel(%arg0: i32, %arg1: memref<8x32xf32, #tpu.memory_space<vmem>>, %arg2: memref<32x128xf32, #tpu.memory_space<vmem>>, %arg3: memref<1x128xf32, #tpu.memory_space<vmem>>, %arg4: memref<128x256xf32, #tpu.memory_space<vmem>>, %arg5: memref<1x256xf32, #tpu.memory_space<vmem>>, %arg6: memref<256x512xf32, #tpu.memory_space<vmem>>, %arg7: memref<1x512xf32, #tpu.memory_space<vmem>>, %arg8: memref<512x256xf32, #tpu.memory_space<vmem>>, %arg9: memref<1x256xf32, #tpu.memory_space<vmem>>, %arg10: memref<256x64xf32, #tpu.memory_space<vmem>>, %arg11: memref<1x64xf32, #tpu.memory_space<vmem>>, %arg12: memref<8x64xf32, #tpu.memory_space<vmem>>) attributes {dimension_semantics = [#tpu.dimension_semantics<parallel>], iteration_bounds = array<i64: 1>, scalar_prefetch = 0 : i64, scratch_operands = 0 : i64, tpu.core_type = #tpu.core_type<tc>, window_params = [{transform_indices = @transform_0, window_bounds = array<i64: 8, 32>}, {pipeline_mode = #tpu.pipeline_mode<synchronous>, transform_indices = @transform_1, window_bounds = array<i64: 32, 128>}, {pipeline_mode = #tpu.pipeline_mode<synchronous>, transform_indices = @transform_2, window_bounds = array<i64: 1, 128>}, {pipeline_mode = #tpu.pipeline_mode<synchronous>, transform_indices = @transform_3, window_bounds = array<i64: 128, 256>}, {pipeline_mode = #tpu.pipeline_mode<synchronous>, transform_indices = @transform_4, window_bounds = array<i64: 1, 256>}, {pipeline_mode = #tpu.pipeline_mode<synchronous>, transform_indices = @transform_5, window_bounds = array<i64: 256, 512>}, {pipeline_mode = #tpu.pipeline_mode<synchronous>, transform_indices = @transform_6, window_bounds = array<i64: 1, 512>}, {pipeline_mode = #tpu.pipeline_mode<synchronous>, transform_indices = @transform_7, window_bounds = array<i64: 512, 256>}, {pipeline_mode = #tpu.pipeline_mode<synchronous>, transform_indices = @transform_8, window_bounds = array<i64: 1, 256>}, {pipeline_mode = #tpu.pipeline_mode<synchronous>, transform_indices = @transform_9, window_bounds = array<i64: 256, 64>}, {pipeline_mode = #tpu.pipeline_mode<synchronous>, transform_indices = @transform_10, window_bounds = array<i64: 1, 64>}, {transform_indices = @transform_11, window_bounds = array<i64: 8, 64>}]} {
    %c0 = arith.constant 0 : index
    %c0_0 = arith.constant 0 : index
    %0 = vector.load %arg1[%c0, %c0_0] : memref<8x32xf32, #tpu.memory_space<vmem>>, vector<8x32xf32>
    %c0_1 = arith.constant 0 : index
    %c0_2 = arith.constant 0 : index
    %1 = vector.load %arg2[%c0_1, %c0_2] : memref<32x128xf32, #tpu.memory_space<vmem>>, vector<32x128xf32>
    %cst = arith.constant dense<0.000000e+00> : vector<8x128xf32>
    %2 = tpu.matmul %0, %1, %cst {dimension_numbers = #tpu.dot_dimension_numbers<[1], [0], [0], [1], [0, 0, 1, 1], [], []>} : vector<8x32xf32>, vector<32x128xf32>, vector<8x128xf32> -> vector<8x128xf32>
    %c0_3 = arith.constant 0 : index
    %c0_4 = arith.constant 0 : index
    %3 = vector.load %arg3[%c0_3, %c0_4] : memref<1x128xf32, #tpu.memory_space<vmem>>, vector<1x128xf32>
    %4 = vector.broadcast %3 : vector<1x128xf32> to vector<8x128xf32>
    %5 = arith.addf %2, %4 : vector<8x128xf32>
    %cst_5 = arith.constant 0.000000e+00 : f32
    %6 = vector.broadcast %cst_5 : f32 to vector<8x128xf32>
    %7 = arith.maximumf %5, %6 : vector<8x128xf32>
    %c0_6 = arith.constant 0 : index
    %c0_7 = arith.constant 0 : index
    %8 = vector.load %arg4[%c0_6, %c0_7] : memref<128x256xf32, #tpu.memory_space<vmem>>, vector<128x256xf32>
    %cst_8 = arith.constant dense<0.000000e+00> : vector<8x256xf32>
    %9 = tpu.matmul %7, %8, %cst_8 {dimension_numbers = #tpu.dot_dimension_numbers<[1], [0], [0], [1], [0, 0, 1, 1], [], []>} : vector<8x128xf32>, vector<128x256xf32>, vector<8x256xf32> -> vector<8x256xf32>
    %c0_9 = arith.constant 0 : index
    %c0_10 = arith.constant 0 : index
    %10 = vector.load %arg5[%c0_9, %c0_10] : memref<1x256xf32, #tpu.memory_space<vmem>>, vector<1x256xf32>
    %11 = vector.broadcast %10 : vector<1x256xf32> to vector<8x256xf32>
    %12 = arith.addf %9, %11 : vector<8x256xf32>
    %cst_11 = arith.constant 0.000000e+00 : f32
    %13 = vector.broadcast %cst_11 : f32 to vector<8x256xf32>
    %14 = arith.maximumf %12, %13 : vector<8x256xf32>
    %c0_12 = arith.constant 0 : index
    %c0_13 = arith.constant 0 : index
    %15 = vector.load %arg6[%c0_12, %c0_13] : memref<256x512xf32, #tpu.memory_space<vmem>>, vector<256x512xf32>
    %cst_14 = arith.constant dense<0.000000e+00> : vector<8x512xf32>
    %16 = tpu.matmul %14, %15, %cst_14 {dimension_numbers = #tpu.dot_dimension_numbers<[1], [0], [0], [1], [0, 0, 1, 1], [], []>} : vector<8x256xf32>, vector<256x512xf32>, vector<8x512xf32> -> vector<8x512xf32>
    %c0_15 = arith.constant 0 : index
    %c0_16 = arith.constant 0 : index
    %17 = vector.load %arg7[%c0_15, %c0_16] : memref<1x512xf32, #tpu.memory_space<vmem>>, vector<1x512xf32>
    %18 = vector.broadcast %17 : vector<1x512xf32> to vector<8x512xf32>
    %19 = arith.addf %16, %18 : vector<8x512xf32>
    %cst_17 = arith.constant 0.000000e+00 : f32
    %20 = vector.broadcast %cst_17 : f32 to vector<8x512xf32>
    %21 = arith.maximumf %19, %20 : vector<8x512xf32>
    %c0_18 = arith.constant 0 : index
    %c0_19 = arith.constant 0 : index
    %22 = vector.load %arg8[%c0_18, %c0_19] : memref<512x256xf32, #tpu.memory_space<vmem>>, vector<512x256xf32>
    %cst_20 = arith.constant dense<0.000000e+00> : vector<8x256xf32>
    %23 = tpu.matmul %21, %22, %cst_20 {dimension_numbers = #tpu.dot_dimension_numbers<[1], [0], [0], [1], [0, 0, 1, 1], [], []>} : vector<8x512xf32>, vector<512x256xf32>, vector<8x256xf32> -> vector<8x256xf32>
    %c0_21 = arith.constant 0 : index
    %c0_22 = arith.constant 0 : index
    %24 = vector.load %arg9[%c0_21, %c0_22] : memref<1x256xf32, #tpu.memory_space<vmem>>, vector<1x256xf32>
    %25 = vector.broadcast %24 : vector<1x256xf32> to vector<8x256xf32>
    %26 = arith.addf %23, %25 : vector<8x256xf32>
    %cst_23 = arith.constant 0.000000e+00 : f32
    %27 = vector.broadcast %cst_23 : f32 to vector<8x256xf32>
    %28 = arith.maximumf %26, %27 : vector<8x256xf32>
    %c0_24 = arith.constant 0 : index
    %c0_25 = arith.constant 0 : index
    %29 = vector.load %arg10[%c0_24, %c0_25] : memref<256x64xf32, #tpu.memory_space<vmem>>, vector<256x64xf32>
    %cst_26 = arith.constant dense<0.000000e+00> : vector<8x64xf32>
    %30 = tpu.matmul %28, %29, %cst_26 {dimension_numbers = #tpu.dot_dimension_numbers<[1], [0], [0], [1], [0, 0, 1, 1], [], []>} : vector<8x256xf32>, vector<256x64xf32>, vector<8x64xf32> -> vector<8x64xf32>
    %c0_27 = arith.constant 0 : index
    %c0_28 = arith.constant 0 : index
    %31 = vector.load %arg11[%c0_27, %c0_28] : memref<1x64xf32, #tpu.memory_space<vmem>>, vector<1x64xf32>
    %32 = vector.broadcast %31 : vector<1x64xf32> to vector<8x64xf32>
    %33 = arith.addf %30, %32 : vector<8x64xf32>
    %cst_29 = arith.constant 0.000000e+00 : f32
    %34 = vector.broadcast %cst_29 : f32 to vector<8x64xf32>
    %35 = arith.maximumf %33, %34 : vector<8x64xf32>
    %c0_30 = arith.constant 0 : index
    %c0_31 = arith.constant 0 : index
    %36 = vector.load %arg12[%c0_30, %c0_31] : memref<8x64xf32, #tpu.memory_space<vmem>>, vector<8x64xf32>
    tpu.vector_store %arg12[%c0_30, %c0_31], %35 {strides = array<i32>} : memref<8x64xf32, #tpu.memory_space<vmem>>, vector<8x64xf32>,
    return
  }
  func.func @transform_0(%arg0: i32) -> (i32, i32) {
    %c0_i32 = arith.constant 0 : i32
    %c0_i32_0 = arith.constant 0 : i32
    return %arg0, %c0_i32 : i32, i32
  }
  func.func @transform_1(%arg0: i32) -> (i32, i32) {
    %c0_i32 = arith.constant 0 : i32
    %c0_i32_0 = arith.constant 0 : i32
    %c0_i32_1 = arith.constant 0 : i32
    return %c0_i32, %c0_i32_0 : i32, i32
  }
  func.func @transform_2(%arg0: i32) -> (i32, i32) {
    %c0_i32 = arith.constant 0 : i32
    %c0_i32_0 = arith.constant 0 : i32
    %c0_i32_1 = arith.constant 0 : i32
    return %c0_i32, %c0_i32_0 : i32, i32
  }
  func.func @transform_3(%arg0: i32) -> (i32, i32) {
    %c0_i32 = arith.constant 0 : i32
    %c0_i32_0 = arith.constant 0 : i32
    %c0_i32_1 = arith.constant 0 : i32
    return %c0_i32, %c0_i32_0 : i32, i32
  }
  func.func @transform_4(%arg0: i32) -> (i32, i32) {
    %c0_i32 = arith.constant 0 : i32
    %c0_i32_0 = arith.constant 0 : i32
    %c0_i32_1 = arith.constant 0 : i32
    return %c0_i32, %c0_i32_0 : i32, i32
  }
  func.func @transform_5(%arg0: i32) -> (i32, i32) {
    %c0_i32 = arith.constant 0 : i32
    %c0_i32_0 = arith.constant 0 : i32
    %c0_i32_1 = arith.constant 0 : i32
    return %c0_i32, %c0_i32_0 : i32, i32
  }
  func.func @transform_6(%arg0: i32) -> (i32, i32) {
    %c0_i32 = arith.constant 0 : i32
    %c0_i32_0 = arith.constant 0 : i32
    %c0_i32_1 = arith.constant 0 : i32
    return %c0_i32, %c0_i32_0 : i32, i32
  }
  func.func @transform_7(%arg0: i32) -> (i32, i32) {
    %c0_i32 = arith.constant 0 : i32
    %c0_i32_0 = arith.constant 0 : i32
    %c0_i32_1 = arith.constant 0 : i32
    return %c0_i32, %c0_i32_0 : i32, i32
  }
  func.func @transform_8(%arg0: i32) -> (i32, i32) {
    %c0_i32 = arith.constant 0 : i32
    %c0_i32_0 = arith.constant 0 : i32
    %c0_i32_1 = arith.constant 0 : i32
    return %c0_i32, %c0_i32_0 : i32, i32
  }
  func.func @transform_9(%arg0: i32) -> (i32, i32) {
    %c0_i32 = arith.constant 0 : i32
    %c0_i32_0 = arith.constant 0 : i32
    %c0_i32_1 = arith.constant 0 : i32
    return %c0_i32, %c0_i32_0 : i32, i32
  }
  func.func @transform_10(%arg0: i32) -> (i32, i32) {
    %c0_i32 = arith.constant 0 : i32
    %c0_i32_0 = arith.constant 0 : i32
    %c0_i32_1 = arith.constant 0 : i32
    return %c0_i32, %c0_i32_0 : i32, i32
  }
  func.func @transform_11(%arg0: i32) -> (i32, i32) {
    %c0_i32 = arith.constant 0 : i32
    %c0_i32_0 = arith.constant 0 : i32
    return %arg0, %c0_i32 : i32, i32
  }
}

</mosaic_0001>

<llo_original>
// kernel: mlp_forward.1
$region0: #{mlp_forward.1}
  #allocation0 [shape = 'u32[]', space=smem, size = 0x4, offset = 0x4, fixed_abs, tag = 'smem constant byte address 0x4 - core index']
  #allocation1 [shape = 'u32[144,128]{1,0:T(1,128)}', space=vmem, size = 0x12000, scoped, tag = 'internal scratch']
  %s0 = inlined_call_operand.vmem [shape: f32[8,32], index: 0, kind: input, shape index: {}]
  %s1 = inlined_call_operand.vmem [shape: f32[32,128], index: 1, kind: input, shape index: {}]
  %s2 = inlined_call_operand.vmem [shape: f32[1,128], index: 2, kind: input, shape index: {}]
  %s3 = inlined_call_operand.vmem [shape: f32[128,256], index: 3, kind: input, shape index: {}]
  %s4 = inlined_call_operand.vmem [shape: f32[1,256], index: 4, kind: input, shape index: {}]
  %s5 = inlined_call_operand.hbm [shape: f32[256,512], index: 5, kind: input, shape index: {}]
  %s6 = inlined_call_operand.vmem [shape: f32[1,512], index: 6, kind: input, shape index: {}]
  %s7 = inlined_call_operand.hbm [shape: f32[512,256], index: 7, kind: input, shape index: {}]
  %s8 = inlined_call_operand.vmem [shape: f32[1,256], index: 8, kind: input, shape index: {}]
  %s9 = inlined_call_operand.vmem [shape: f32[256,64], index: 9, kind: input, shape index: {}]
  %s10 = inlined_call_operand.vmem [shape: f32[1,64], index: 10, kind: input, shape index: {}]
  %s11 = inlined_call_operand.hbm [shape: f32[8,64], index: 11, kind: output, shape index: {}]
  %s12 = sld [smem:[#allocation0]]
  $region62: #{mlp_forward.1} parent=0
    _
  %s14 = ssub.s32 1, %s12
  %s15 = scalar_select 0, %s14, %s12
  $region1: #{mlp_forward.1} parent=0
    #allocation2 [shape = 'u8[524288]{0}', space=vmem, size = 0x80000, scoped, tag = 'input window, operand 5, single buffered']
    #allocation3 [shape = 's32[1]{0}', space=sflag, size = 0x4, scoped, tag = 'scoped memory for mlp_forward.1']
    #allocation4 [shape = 's32[1]{0}', space=sflag, size = 0x4, scoped, tag = 'scoped memory for mlp_forward.1']
    #allocation5 [shape = 'u8[524288]{0}', space=vmem, size = 0x80000, scoped, tag = 'input window, operand 7, single buffered']
    #allocation6 [shape = 's32[1]{0}', space=sflag, size = 0x4, scoped, tag = 'scoped memory for mlp_forward.1']
    #allocation7 [shape = 'u8[4096]{0}', space=vmem, size = 0x1000, scoped, tag = 'output window, operand 0, single buffered']
    %16 = vsyncpa [#allocation3], 0
    %17 = vsyncpa [#allocation6], 0
    %18 = vsyncpa [#allocation4], 0
    // Predicated region
    $region2: #{mlp_forward.1} parent=1 // pred_check
      _
    $region3: #{mlp_forward.1} parent=1 // pred_check_branch
      %20 = sbr.rel (0) target = $region5
    $region4: #{mlp_forward.1} parent=1 // pred_region
      _
    $region5: #{mlp_forward.1} parent=1 // pred_fallthru
      _
    // Predicated region
    $region6: #{mlp_forward.1} parent=1 // pred_check
      _
    $region7: #{mlp_forward.1} parent=1 // pred_check_branch
      %22 = sbr.rel (0) target = $region9
    $region8: #{mlp_forward.1} parent=1 // pred_region
      _
    $region9: #{mlp_forward.1} parent=1 // pred_fallthru
      _
    // Predicated region
    $region10: #{mlp_forward.1} parent=1 // pred_check
      _
    $region11: #{mlp_forward.1} parent=1 // pred_check_branch
      %24 = sbr.rel (0) target = $region13
    $region12: #{mlp_forward.1} parent=1 // pred_region
      _
    $region13: #{mlp_forward.1} parent=1 // pred_fallthru
      _
    // Predicated region
    $region14: #{mlp_forward.1} parent=1 // pred_check
      _
    $region15: #{mlp_forward.1} parent=1 // pred_check_branch
      %26 = sbr.rel (0) target = $region17
    $region16: #{mlp_forward.1} parent=1 // pred_region
      _
    $region17: #{mlp_forward.1} parent=1 // pred_fallthru
      _
    // Predicated region
    $region18: #{mlp_forward.1} parent=1 // pred_check
      _
    $region19: #{mlp_forward.1} parent=1 // pred_check_branch
      %28 = sbr.rel (0) target = $region21
    $region20: #{mlp_forward.1} parent=1 // pred_region
      _
    $region21: #{mlp_forward.1} parent=1 // pred_fallthru
      _
    // Predicated region
    $region22: #{mlp_forward.1} parent=1 // pred_check
      _
    $region23: #{mlp_forward.1} parent=1 // pred_check_branch
      %30 = sbr.rel (0) target = $region25
    $region24: #{mlp_forward.1} parent=1 // pred_region
      %s32 = ssub.s32 16384, 16384
      %33 = vsyncadd [#allocation3], %s32
      %s34 = sshll.u32 [#allocation2], 4
      %s35 = int_to_ptr.vmem [resolvable:$true] %s34
      %40 = dma.hbm_to_vmem [thread:$0]  %s5, 16384, %s35, [#allocation3], 512, 512, 32
    $region25: #{mlp_forward.1} parent=1 // pred_fallthru
      _
    // Predicated region
    $region26: #{mlp_forward.1} parent=1 // pred_check
      _
    $region27: #{mlp_forward.1} parent=1 // pred_check_branch
      %42 = sbr.rel (0) target = $region29
    $region28: #{mlp_forward.1} parent=1 // pred_region
      _
    $region29: #{mlp_forward.1} parent=1 // pred_fallthru
      _
    // Predicated region
    $region30: #{mlp_forward.1} parent=1 // pred_check
      _
    $region31: #{mlp_forward.1} parent=1 // pred_check_branch
      %44 = sbr.rel (0) target = $region33
    $region32: #{mlp_forward.1} parent=1 // pred_region
      %s46 = ssub.s32 16384, 16384
      %47 = vsyncadd [#allocation6], %s46
      %s48 = sshll.u32 [#allocation5], 4
      %s49 = int_to_ptr.vmem [resolvable:$true] %s48
      %54 = dma.hbm_to_vmem [thread:$0]  %s7, 16384, %s49, [#allocation6], 256, 256, 16
    $region33: #{mlp_forward.1} parent=1 // pred_fallthru
      _
    // Predicated region
    $region34: #{mlp_forward.1} parent=1 // pred_check
      _
    $region35: #{mlp_forward.1} parent=1 // pred_check_branch
      %56 = sbr.rel (0) target = $region37
    $region36: #{mlp_forward.1} parent=1 // pred_region
      _
    $region37: #{mlp_forward.1} parent=1 // pred_fallthru
      _
    // Predicated region
    $region38: #{mlp_forward.1} parent=1 // pred_check
      _
    $region39: #{mlp_forward.1} parent=1 // pred_check_branch
      %58 = sbr.rel (0) target = $region41
    $region40: #{mlp_forward.1} parent=1 // pred_region
      _
    $region41: #{mlp_forward.1} parent=1 // pred_fallthru
      _
    // Predicated region
    $region42: #{mlp_forward.1} parent=1 // pred_check
      _
    $region43: #{mlp_forward.1} parent=1 // pred_check_branch
      %60 = sbr.rel (0) target = $region45
    $region44: #{mlp_forward.1} parent=1 // pred_region
      _
    $region45: #{mlp_forward.1} parent=1 // pred_fallthru
      _
    // Predicated region
    $region46: #{mlp_forward.1} parent=1 // pred_check
      _
    $region47: #{mlp_forward.1} parent=1 // pred_check_branch
      %62 = sbr.rel (0) target = $region49
    $region48: #{mlp_forward.1} parent=1 // pred_region
      %63 = dma.done [#allocation3], 16384
    $region49: #{mlp_forward.1} parent=1 // pred_fallthru
      _
    // Predicated region
    $region50: #{mlp_forward.1} parent=1 // pred_check
      _
    $region51: #{mlp_forward.1} parent=1 // pred_check_branch
      %65 = sbr.rel (0) target = $region53
    $region52: #{mlp_forward.1} parent=1 // pred_region
      %66 = dma.done [#allocation6], 16384
    $region53: #{mlp_forward.1} parent=1 // pred_fallthru
      _
    %v67 = vld [vmem:[%s0] sm:$0xff]
    %v68 = vld [vmem:[%s1] sm:$0xff]
    %v69 = vld [vmem:[%s1 + $0x8] sm:$0xff]
    %v70 = vld [vmem:[%s1 + $0x10] sm:$0xff]
    %v71 = vld [vmem:[%s1 + $0x18] sm:$0xff]
    %v72 = vld [vmem:[%s2] sm:$0x1]
    %v74 = vlaneseq
    %v75 = vshrl.u32 %v74, 7
    %v76 = vsub.s32 0, %v75
    %v77 = vrot.slane %v72, %v76
    %vm79 = vcmask 261120
    %v81 = vsel %vm79, %v67, 0
    %83 = vmatprep.subr.mxu0 0.0
    %84 = vmatpush1.msra.mxu0 %v68
    %85 = vmatprep.subr.mxu0 0.0
    %86 = vmatpush1.msra.mxu0 %v69
    %87 = vmatprep.subr.mxu0 0.0
    %88 = vmatpush1.msra.mxu0 %v70
    %89 = vmatprep.subr.mxu0 0.0
    %90 = vmatpush1.msra.mxu0 %v71
    %91 = vmatprep.subr.mxu0 0.0
    %92 = vmatpush1.msra.mxu0 0.0
    %93 = vmatprep.subr.mxu0 0.0
    %94 = vmatpush1.msra.mxu0 0.0
    %95 = vmatprep.subr.mxu0 0.0
    %96 = vmatpush1.msra.mxu0 0.0
    %97 = vmatprep.subr.mxu0 0.0
    %98 = vmatpush1.msra.mxu0 0.0
    %99 = vmatprep.subr.mxu0 0.0
    %100 = vmatpush1.msra.mxu0 0.0
    %101 = vmatprep.subr.mxu0 0.0
    %102 = vmatpush1.msra.mxu0 0.0
    %103 = vmatprep.subr.mxu0 0.0
    %104 = vmatpush1.msra.mxu0 0.0
    %105 = vmatprep.subr.mxu0 0.0
    %106 = vmatpush1.msra.mxu0 0.0
    %107 = vmatprep.subr.mxu0 0.0
    %108 = vmatpush1.msra.mxu0 0.0
    %109 = vmatprep.subr.mxu0 0.0
    %110 = vmatpush1.msra.mxu0 0.0
    %111 = vmatprep.subr.mxu0 0.0
    %112 = vmatpush1.msra.mxu0 0.0
    %113 = vmatprep.subr.mxu0 0.0
    %114 = vmatpush1.msra.mxu0 0.0
    %115 = vmatprep.subr.mxu0 0.0
    %116 = vmatpush1.msra.mxu0 0.0
    %117 = vmatprep.subr.mxu0 0.0
    %118 = vmatpush1.msra.mxu0 0.0
    %119 = vmatprep.subr.mxu0 0.0
    %120 = vmatpush1.msra.mxu0 0.0
    %121 = vmatprep.subr.mxu0 0.0
    %122 = vmatpush1.msra.mxu0 0.0
    %123 = vmatprep.subr.mxu0 0.0
    %124 = vmatpush1.msra.mxu0 0.0
    %125 = vmatprep.subr.mxu0 0.0
    %126 = vmatpush1.msra.mxu0 0.0
    %127 = vmatprep.subr.mxu0 0.0
    %128 = vmatpush1.msra.mxu0 0.0
    %129 = vmatprep.subr.mxu0 0.0
    %130 = vmatpush1.msra.mxu0 0.0
    %131 = vmatprep.subr.mxu0 0.0
    %132 = vmatpush1.msra.mxu0 0.0
    %133 = vmatprep.subr.mxu0 0.0
    %134 = vmatpush1.msra.mxu0 0.0
    %135 = vmatprep.subr.mxu0 0.0
    %136 = vmatpush1.msra.mxu0 0.0
    %137 = vmatprep.subr.mxu0 0.0
    %138 = vmatpush1.msra.mxu0 0.0
    %139 = vmatprep.subr.mxu0 0.0
    %140 = vmatpush1.msra.mxu0 0.0
    %141 = vmatprep.subr.mxu0 0.0
    %142 = vmatpush1.msra.mxu0 0.0
    %143 = vmatprep.subr.mxu0 0.0
    %144 = vmatpush1.msra.mxu0 0.0
    %145 = vmatprep.subr.mxu0 0.0
    %146 = vmatpush1.msra.mxu0 0.0
    %147 = vmatprep.mubr.f32.mxu0 0.0
    %148 = vmatmul.mubr.f32.gmra.mrb[0].mxu0 %v81
    %v149 = vpop.f32.mrb[0].mxu0
    %v150 = vadd.f32 %v77, %v149
    %v151 = vpop.f32.mrb[0].mxu0
    %152 = vdwg.mxu0
    %v153 = vmax.f32 %v150, 0.0
    %v154 = vld [vmem:[%s3] sm:$0xff]
    %v155 = vld [vmem:[%s3 + $0x8] sm:$0xff]
    %v156 = vld [vmem:[%s3 + $0x10] sm:$0xff]
    %v157 = vld [vmem:[%s3 + $0x18] sm:$0xff]
    %v158 = vld [vmem:[%s3 + $0x20] sm:$0xff]
    %v159 = vld [vmem:[%s3 + $0x28] sm:$0xff]
    %v160 = vld [vmem:[%s3 + $0x30] sm:$0xff]
    %v161 = vld [vmem:[%s3 + $0x38] sm:$0xff]
    %v162 = vld [vmem:[%s3 + $0x40] sm:$0xff]
    %v163 = vld [vmem:[%s3 + $0x48] sm:$0xff]
    %v164 = vld [vmem:[%s3 + $0x50] sm:$0xff]
    %v165 = vld [vmem:[%s3 + $0x58] sm:$0xff]
    %v166 = vld [vmem:[%s3 + $0x60] sm:$0xff]
    %v167 = vld [vmem:[%s3 + $0x68] sm:$0xff]
    %v168 = vld [vmem:[%s3 + $0x70] sm:$0xff]
    %v169 = vld [vmem:[%s3 + $0x78] sm:$0xff]
    %v170 = vld [vmem:[%s3 + $0x80] sm:$0xff]
    %v171 = vld [vmem:[%s3 + $0x88] sm:$0xff]
    %v172 = vld [vmem:[%s3 + $0x90] sm:$0xff]
    %v173 = vld [vmem:[%s3 + $0x98] sm:$0xff]
    %v174 = vld [vmem:[%s3 + $0xa0] sm:$0xff]
    %v175 = vld [vmem:[%s3 + $0xa8] sm:$0xff]
    %v176 = vld [vmem:[%s3 + $0xb0] sm:$0xff]
    %v177 = vld [vmem:[%s3 + $0xb8] sm:$0xff]
    %v178 = vld [vmem:[%s3 + $0xc0] sm:$0xff]
    %v179 = vld [vmem:[%s3 + $0xc8] sm:$0xff]
    %v180 = vld [vmem:[%s3 + $0xd0] sm:$0xff]
    %v181 = vld [vmem:[%s3 + $0xd8] sm:$0xff]
    %v182 = vld [vmem:[%s3 + $0xe0] sm:$0xff]
    %v183 = vld [vmem:[%s3 + $0xe8] sm:$0xff]
    %v184 = vld [vmem:[%s3 + $0xf0] sm:$0xff]
    %v185 = vld [vmem:[%s3 + $0xf8] sm:$0xff]
    %v186 = vld [vmem:[%s4] sm:$0x3]
    %v188 = vlaneseq
    %v189 = vshrl.u32 %v188, 7
    %v190 = vsub.s32 0, %v189
    %v191 = vrot.slane %v186, %v190
    %v192 = vlaneseq
    %v193 = vshrl.u32 %v192, 7
    %v194 = vsub.s32 1, %v193
    %v195 = vrot.slane %v186, %v194
    %198 = vmatprep.subr.mxu0 %v155
    %199 = vmatpush1.msra.mxu0 %v154
    %200 = vmatprep.subr.mxu0 %v157
    %201 = vmatpush1.msra.mxu0 %v156
    %202 = vmatprep.subr.mxu0 %v159
    %203 = vmatpush1.msra.mxu0 %v158
    %204 = vmatprep.subr.mxu0 %v161
    %205 = vmatpush1.msra.mxu0 %v160
    %206 = vmatprep.subr.mxu0 %v163
    %207 = vmatpush1.msra.mxu0 %v162
    %208 = vmatprep.subr.mxu0 %v165
    %209 = vmatpush1.msra.mxu0 %v164
    %210 = vmatprep.subr.mxu0 %v167
    %211 = vmatpush1.msra.mxu0 %v166
    %212 = vmatprep.subr.mxu0 %v169
    %213 = vmatpush1.msra.mxu0 %v168
    %214 = vmatprep.subr.mxu0 %v171
    %215 = vmatpush1.msra.mxu0 %v170
    %216 = vmatprep.subr.mxu0 %v173
    %217 = vmatpush1.msra.mxu0 %v172
    %218 = vmatprep.subr.mxu0 %v175
    %219 = vmatpush1.msra.mxu0 %v174
    %220 = vmatprep.subr.mxu0 %v177
    %221 = vmatpush1.msra.mxu0 %v176
    %222 = vmatprep.subr.mxu0 %v179
    %223 = vmatpush1.msra.mxu0 %v178
    %224 = vmatprep.subr.mxu0 %v181
    %225 = vmatpush1.msra.mxu0 %v180
    %226 = vmatprep.subr.mxu0 %v183
    %227 = vmatpush1.msra.mxu0 %v182
    %228 = vmatprep.subr.mxu0 %v185
    %229 = vmatpush1.msra.mxu0 %v184
    %230 = vmatprep.subr.mxu0 0.0
    %231 = vmatpush1.msra.mxu0 0.0
    %232 = vmatprep.subr.mxu0 0.0
    %233 = vmatpush1.msra.mxu0 0.0
    %234 = vmatprep.subr.mxu0 0.0
    %235 = vmatpush1.msra.mxu0 0.0
    %236 = vmatprep.subr.mxu0 0.0
    %237 = vmatpush1.msra.mxu0 0.0
    %238 = vmatprep.subr.mxu0 0.0
    %239 = vmatpush1.msra.mxu0 0.0
    %240 = vmatprep.subr.mxu0 0.0
    %241 = vmatpush1.msra.mxu0 0.0
    %242 = vmatprep.subr.mxu0 0.0
    %243 = vmatpush1.msra.mxu0 0.0
    %244 = vmatprep.subr.mxu0 0.0
    %245 = vmatpush1.msra.mxu0 0.0
    %246 = vmatprep.subr.mxu0 0.0
    %247 = vmatpush1.msra.mxu0 0.0
    %248 = vmatprep.subr.mxu0 0.0
    %249 = vmatpush1.msra.mxu0 0.0
    %250 = vmatprep.subr.mxu0 0.0
    %251 = vmatpush1.msra.mxu0 0.0
    %252 = vmatprep.subr.mxu0 0.0
    %253 = vmatpush1.msra.mxu0 0.0
    %254 = vmatprep.subr.mxu0 0.0
    %255 = vmatpush1.msra.mxu0 0.0
    %256 = vmatprep.subr.mxu0 0.0
    %257 = vmatpush1.msra.mxu0 0.0
    %258 = vmatprep.subr.mxu0 0.0
    %259 = vmatpush1.msra.mxu0 0.0
    %260 = vmatprep.subr.mxu0 0.0
    %261 = vmatpush1.msra.mxu0 0.0
    %262 = vmatprep.mubr.f32.mxu0 0.0
    %263 = vmatmul.mubr.f32.gmra.mrb[0].mxu0 %v153
    %v264 = vpop.f32.mrb[0].mxu0
    %v265 = vadd.f32 %v191, %v264
    %v266 = vpop.f32.mrb[0].mxu0
    %v267 = vadd.f32 %v195, %v266
    %268 = vdwg.mxu0
    %v269 = vmax.f32 %v265, 0.0
    %v270 = vmax.f32 %v267, 0.0
    %v271 = vld [vmem:[#allocation2] sm:$0xff]
    %v272 = vld [vmem:[#allocation2 + $0x8] sm:$0xff]
    %v273 = vld [vmem:[#allocation2 + $0x10] sm:$0xff]
    %v274 = vld [vmem:[#allocation2 + $0x18] sm:$0xff]
    %v275 = vld [vmem:[#allocation2 + $0x20] sm:$0xff]
    %v276 = vld [vmem:[#allocation2 + $0x28] sm:$0xff]
    %v277 = vld [vmem:[#allocation2 + $0x30] sm:$0xff]
    %v278 = vld [vmem:[#allocation2 + $0x38] sm:$0xff]
    %v279 = vld [vmem:[#allocation2 + $0x40] sm:$0xff]
    %v280 = vld [vmem:[#allocation2 + $0x48] sm:$0xff]
    %v281 = vld [vmem:[#allocation2 + $0x50] sm:$0xff]
    %v282 = vld [vmem:[#allocation2 + $0x58] sm:$0xff]
    %v283 = vld [vmem:[#allocation2 + $0x60] sm:$0xff]
    %v284 = vld [vmem:[#allocation2 + $0x68] sm:$0xff]
    %v285 = vld [vmem:[#allocation2 + $0x70] sm:$0xff]
    %v286 = vld [vmem:[#allocation2 + $0x78] sm:$0xff]
    %v287 = vld [vmem:[#allocation2 + $0x80] sm:$0xff]
    %v288 = vld [vmem:[#allocation2 + $0x88] sm:$0xff]
    %v289 = vld [vmem:[#allocation2 + $0x90] sm:$0xff]
    %v290 = vld [vmem:[#allocation2 + $0x98] sm:$0xff]
    %v291 = vld [vmem:[#allocation2 + $0xa0] sm:$0xff]
    %v292 = vld [vmem:[#allocation2 + $0xa8] sm:$0xff]
    %v293 = vld [vmem:[#allocation2 + $0xb0] sm:$0xff]
    %v294 = vld [vmem:[#allocation2 + $0xb8] sm:$0xff]
    %v295 = vld [vmem:[#allocation2 + $0xc0] sm:$0xff]
    %v296 = vld [vmem:[#allocation2 + $0xc8] sm:$0xff]
    %v297 = vld [vmem:[#allocation2 + $0xd0] sm:$0xff]
    %v298 = vld [vmem:[#allocation2 + $0xd8] sm:$0xff]
    %v299 = vld [vmem:[#allocation2 + $0xe0] sm:$0xff]
    %v300 = vld [vmem:[#allocation2 + $0xe8] sm:$0xff]
    %v301 = vld [vmem:[#allocation2 + $0xf0] sm:$0xff]
    %v302 = vld [vmem:[#allocation2 + $0xf8] sm:$0xff]
    %v303 = vld [vmem:[#allocation2 + $0x100] sm:$0xff]
    %v304 = vld [vmem:[#allocation2 + $0x108] sm:$0xff]
    %v305 = vld [vmem:[#allocation2 + $0x110] sm:$0xff]
    %v306 = vld [vmem:[#allocation2 + $0x118] sm:$0xff]
    %v307 = vld [vmem:[#allocation2 + $0x120] sm:$0xff]
    %v308 = vld [vmem:[#allocation2 + $0x128] sm:$0xff]
    %v309 = vld [vmem:[#allocation2 + $0x130] sm:$0xff]
    %v310 = vld [vmem:[#allocation2 + $0x138] sm:$0xff]
    %v311 = vld [vmem:[#allocation2 + $0x140] sm:$0xff]
    %v312 = vld [vmem:[#allocation2 + $0x148] sm:$0xff]
    %v313 = vld [vmem:[#allocation2 + $0x150] sm:$0xff]
    %v314 = vld [vmem:[#allocation2 + $0x158] sm:$0xff]
    %v315 = vld [vmem:[#allocation2 + $0x160] sm:$0xff]
    %v316 = vld [vmem:[#allocation2 + $0x168] sm:$0xff]
    %v317 = vld [vmem:[#allocation2 + $0x170] sm:$0xff]
    %v318 = vld [vmem:[#allocation2 + $0x178] sm:$0xff]
    %v319 = vld [vmem:[#allocation2 + $0x180] sm:$0xff]
    %v320 = vld [vmem:[#allocation2 + $0x188] sm:$0xff]
    %v321 = vld [vmem:[#allocation2 + $0x190] sm:$0xff]
    %v322 = vld [vmem:[#allocation2 + $0x198] sm:$0xff]
    %v323 = vld [vmem:[#allocation2 + $0x1a0] sm:$0xff]
    %v324 = vld [vmem:[#allocation2 + $0x1a8] sm:$0xff]
    %v325 = vld [vmem:[#allocation2 + $0x1b0] sm:$0xff]
    %v326 = vld [vmem:[#allocation2 + $0x1b8] sm:$0xff]
    %v327 = vld [vmem:[#allocation2 + $0x1c0] sm:$0xff]
    %v328 = vld [vmem:[#allocation2 + $0x1c8] sm:$0xff]
    %v329 = vld [vmem:[#allocation2 + $0x1d0] sm:$0xff]
    %v330 = vld [vmem:[#allocation2 + $0x1d8] sm:$0xff]
    %v331 = vld [vmem:[#allocation2 + $0x1e0] sm:$0xff]
    %v332 = vld [vmem:[#allocation2 + $0x1e8] sm:$0xff]
    %v333 = vld [vmem:[#allocation2 + $0x1f0] sm:$0xff]
    %v334 = vld [vmem:[#allocation2 + $0x1f8] sm:$0xff]
    %v335 = vld [vmem:[#allocation2 + $0x200] sm:$0xff]
    %v336 = vld [vmem:[#allocation2 + $0x208] sm:$0xff]
    %v337 = vld [vmem:[#allocation2 + $0x210] sm:$0xff]
    %v338 = vld [vmem:[#allocation2 + $0x218] sm:$0xff]
    %v339 = vld [vmem:[#allocation2 + $0x220] sm:$0xff]
    %v340 = vld [vmem:[#allocation2 + $0x228] sm:$0xff]
    %v341 = vld [vmem:[#allocation2 + $0x230] sm:$0xff]
    %v342 = vld [vmem:[#allocation2 + $0x238] sm:$0xff]
    %v343 = vld [vmem:[#allocation2 + $0x240] sm:$0xff]
    %v344 = vld [vmem:[#allocation2 + $0x248] sm:$0xff]
    %v345 = vld [vmem:[#allocation2 + $0x250] sm:$0xff]
    %v346 = vld [vmem:[#allocation2 + $0x258] sm:$0xff]
    %v347 = vld [vmem:[#allocation2 + $0x260] sm:$0xff]
    %v348 = vld [vmem:[#allocation2 + $0x268] sm:$0xff]
    %v349 = vld [vmem:[#allocation2 + $0x270] sm:$0xff]
    %v350 = vld [vmem:[#allocation2 + $0x278] sm:$0xff]
    %v351 = vld [vmem:[#allocation2 + $0x280] sm:$0xff]
    %v352 = vld [vmem:[#allocation2 + $0x288] sm:$0xff]
    %v353 = vld [vmem:[#allocation2 + $0x290] sm:$0xff]
    %v354 = vld [vmem:[#allocation2 + $0x298] sm:$0xff]
    %v355 = vld [vmem:[#allocation2 + $0x2a0] sm:$0xff]
    %v356 = vld [vmem:[#allocation2 + $0x2a8] sm:$0xff]
    %v357 = vld [vmem:[#allocation2 + $0x2b0] sm:$0xff]
    %v358 = vld [vmem:[#allocation2 + $0x2b8] sm:$0xff]
    %v359 = vld [vmem:[#allocation2 + $0x2c0] sm:$0xff]
    %v360 = vld [vmem:[#allocation2 + $0x2c8] sm:$0xff]
    %v361 = vld [vmem:[#allocation2 + $0x2d0] sm:$0xff]
    %v362 = vld [vmem:[#allocation2 + $0x2d8] sm:$0xff]
    %v363 = vld [vmem:[#allocation2 + $0x2e0] sm:$0xff]
    %v364 = vld [vmem:[#allocation2 + $0x2e8] sm:$0xff]
    %v365 = vld [vmem:[#allocation2 + $0x2f0] sm:$0xff]
    %v366 = vld [vmem:[#allocation2 + $0x2f8] sm:$0xff]
    %v367 = vld [vmem:[#allocation2 + $0x300] sm:$0xff]
    %v368 = vld [vmem:[#allocation2 + $0x308] sm:$0xff]
    %v369 = vld [vmem:[#allocation2 + $0x310] sm:$0xff]
    %v370 = vld [vmem:[#allocation2 + $0x318] sm:$0xff]
    %v371 = vld [vmem:[#allocation2 + $0x320] sm:$0xff]
    %v372 = vld [vmem:[#allocation2 + $0x328] sm:$0xff]
    %v373 = vld [vmem:[#allocation2 + $0x330] sm:$0xff]
    %v374 = vld [vmem:[#allocation2 + $0x338] sm:$0xff]
    %v375 = vld [vmem:[#allocation2 + $0x340] sm:$0xff]
    %v376 = vld [vmem:[#allocation2 + $0x348] sm:$0xff]
    %v377 = vld [vmem:[#allocation2 + $0x350] sm:$0xff]
    %v378 = vld [vmem:[#allocation2 + $0x358] sm:$0xff]
    %v379 = vld [vmem:[#allocation2 + $0x360] sm:$0xff]
    %v380 = vld [vmem:[#allocation2 + $0x368] sm:$0xff]
    %v381 = vld [vmem:[#allocation2 + $0x370] sm:$0xff]
    %v382 = vld [vmem:[#allocation2 + $0x378] sm:$0xff]
    %v383 = vld [vmem:[#allocation2 + $0x380] sm:$0xff]
    %v384 = vld [vmem:[#allocation2 + $0x388] sm:$0xff]
    %v385 = vld [vmem:[#allocation2 + $0x390] sm:$0xff]
    %v386 = vld [vmem:[#allocation2 + $0x398] sm:$0xff]
    %v387 = vld [vmem:[#allocation2 + $0x3a0] sm:$0xff]
    %v388 = vld [vmem:[#allocation2 + $0x3a8] sm:$0xff]
    %v389 = vld [vmem:[#allocation2 + $0x3b0] sm:$0xff]
    %v390 = vld [vmem:[#allocation2 + $0x3b8] sm:$0xff]
    %v391 = vld [vmem:[#allocation2 + $0x3c0] sm:$0xff]
    %v392 = vld [vmem:[#allocation2 + $0x3c8] sm:$0xff]
    %v393 = vld [vmem:[#allocation2 + $0x3d0] sm:$0xff]
    %v394 = vld [vmem:[#allocation2 + $0x3d8] sm:$0xff]
    %v395 = vld [vmem:[#allocation2 + $0x3e0] sm:$0xff]
    %v396 = vld [vmem:[#allocation2 + $0x3e8] sm:$0xff]
    %v397 = vld [vmem:[#allocation2 + $0x3f0] sm:$0xff]
    %v398 = vld [vmem:[#allocation2 + $0x3f8] sm:$0xff]
    %v399 = vld [vmem:[%s6] sm:$0xf]
    %v401 = vlaneseq
    %v402 = vshrl.u32 %v401, 7
    %v403 = vsub.s32 0, %v402
    %v404 = vrot.slane %v399, %v403
    %v405 = vlaneseq
    %v406 = vshrl.u32 %v405, 7
    %v407 = vsub.s32 1, %v406
    %v408 = vrot.slane %v399, %v407
    %v409 = vlaneseq
    %v410 = vshrl.u32 %v409, 7
    %v411 = vsub.s32 2, %v410
    %v412 = vrot.slane %v399, %v411
    %v413 = vlaneseq
    %v414 = vshrl.u32 %v413, 7
    %v415 = vsub.s32 3, %v414
    %v416 = vrot.slane %v399, %v415
    %421 = vmatprep.subr.mxu0 %v272
    %422 = vmatpush1.msra.mxu0 %v271
    %423 = vmatprep.subr.mxu0 %v276
    %424 = vmatpush1.msra.mxu0 %v275
    %425 = vmatprep.subr.mxu0 %v280
    %426 = vmatpush1.msra.mxu0 %v279
    %427 = vmatprep.subr.mxu0 %v284
    %428 = vmatpush1.msra.mxu0 %v283
    %429 = vmatprep.subr.mxu0 %v288
    %430 = vmatpush1.msra.mxu0 %v287
    %431 = vmatprep.subr.mxu0 %v292
    %432 = vmatpush1.msra.mxu0 %v291
    %433 = vmatprep.subr.mxu0 %v296
    %434 = vmatpush1.msra.mxu0 %v295
    %435 = vmatprep.subr.mxu0 %v300
    %436 = vmatpush1.msra.mxu0 %v299
    %437 = vmatprep.subr.mxu0 %v304
    %438 = vmatpush1.msra.mxu0 %v303
    %439 = vmatprep.subr.mxu0 %v308
    %440 = vmatpush1.msra.mxu0 %v307
    %441 = vmatprep.subr.mxu0 %v312
    %442 = vmatpush1.msra.mxu0 %v311
    %443 = vmatprep.subr.mxu0 %v316
    %444 = vmatpush1.msra.mxu0 %v315
    %445 = vmatprep.subr.mxu0 %v320
    %446 = vmatpush1.msra.mxu0 %v319
    %447 = vmatprep.subr.mxu0 %v324
    %448 = vmatpush1.msra.mxu0 %v323
    %449 = vmatprep.subr.mxu0 %v328
    %450 = vmatpush1.msra.mxu0 %v327
    %451 = vmatprep.subr.mxu0 %v332
    %452 = vmatpush1.msra.mxu0 %v331
    %453 = vmatprep.subr.mxu0 %v336
    %454 = vmatpush1.msra.mxu0 %v335
    %455 = vmatprep.subr.mxu0 %v340
    %456 = vmatpush1.msra.mxu0 %v339
    %457 = vmatprep.subr.mxu0 %v344
    %458 = vmatpush1.msra.mxu0 %v343
    %459 = vmatprep.subr.mxu0 %v348
    %460 = vmatpush1.msra.mxu0 %v347
    %461 = vmatprep.subr.mxu0 %v352
    %462 = vmatpush1.msra.mxu0 %v351
    %463 = vmatprep.subr.mxu0 %v356
    %464 = vmatpush1.msra.mxu0 %v355
    %465 = vmatprep.subr.mxu0 %v360
    %466 = vmatpush1.msra.mxu0 %v359
    %467 = vmatprep.subr.mxu0 %v364
    %468 = vmatpush1.msra.mxu0 %v363
    %469 = vmatprep.subr.mxu0 %v368
    %470 = vmatpush1.msra.mxu0 %v367
    %471 = vmatprep.subr.mxu0 %v372
    %472 = vmatpush1.msra.mxu0 %v371
    %473 = vmatprep.subr.mxu0 %v376
    %474 = vmatpush1.msra.mxu0 %v375
    %475 = vmatprep.subr.mxu0 %v380
    %476 = vmatpush1.msra.mxu0 %v379
    %477 = vmatprep.subr.mxu0 %v384
    %478 = vmatpush1.msra.mxu0 %v383
    %479 = vmatprep.subr.mxu0 %v388
    %480 = vmatpush1.msra.mxu0 %v387
    %481 = vmatprep.subr.mxu0 %v392
    %482 = vmatpush1.msra.mxu0 %v391
    %483 = vmatprep.subr.mxu0 %v396
    %484 = vmatpush1.msra.mxu0 %v395
    %485 = vmatprep.mubr.f32.mxu0 %v270
    %486 = vmatmul.mubr.f32.gmra.mrb[0].mxu0 %v269
    %v487 = vpop.f32.mrb[0].mxu0
    %v488 = vadd.f32 %v404, %v487
    %v489 = vpop.f32.mrb[0].mxu0
    %v490 = vadd.f32 %v408, %v489
    %491 = vdwg.mxu0
    %492 = vmatprep.subr.mxu0 %v274
    %493 = vmatpush1.msra.mxu0 %v273
    %494 = vmatprep.subr.mxu0 %v278
    %495 = vmatpush1.msra.mxu0 %v277
    %496 = vmatprep.subr.mxu0 %v282
    %497 = vmatpush1.msra.mxu0 %v281
    %498 = vmatprep.subr.mxu0 %v286
    %499 = vmatpush1.msra.mxu0 %v285
    %500 = vmatprep.subr.mxu0 %v290
    %501 = vmatpush1.msra.mxu0 %v289
    %502 = vmatprep.subr.mxu0 %v294
    %503 = vmatpush1.msra.mxu0 %v293
    %504 = vmatprep.subr.mxu0 %v298
    %505 = vmatpush1.msra.mxu0 %v297
    %506 = vmatprep.subr.mxu0 %v302
    %507 = vmatpush1.msra.mxu0 %v301
    %508 = vmatprep.subr.mxu0 %v306
    %509 = vmatpush1.msra.mxu0 %v305
    %510 = vmatprep.subr.mxu0 %v310
    %511 = vmatpush1.msra.mxu0 %v309
    %512 = vmatprep.subr.mxu0 %v314
    %513 = vmatpush1.msra.mxu0 %v313
    %514 = vmatprep.subr.mxu0 %v318
    %515 = vmatpush1.msra.mxu0 %v317
    %516 = vmatprep.subr.mxu0 %v322
    %517 = vmatpush1.msra.mxu0 %v321
    %518 = vmatprep.subr.mxu0 %v326
    %519 = vmatpush1.msra.mxu0 %v325
    %520 = vmatprep.subr.mxu0 %v330
    %521 = vmatpush1.msra.mxu0 %v329
    %522 = vmatprep.subr.mxu0 %v334
    %523 = vmatpush1.msra.mxu0 %v333
    %524 = vmatprep.subr.mxu0 %v338
    %525 = vmatpush1.msra.mxu0 %v337
    %526 = vmatprep.subr.mxu0 %v342
    %527 = vmatpush1.msra.mxu0 %v341
    %528 = vmatprep.subr.mxu0 %v346
    %529 = vmatpush1.msra.mxu0 %v345
    %530 = vmatprep.subr.mxu0 %v350
    %531 = vmatpush1.msra.mxu0 %v349
    %532 = vmatprep.subr.mxu0 %v354
    %533 = vmatpush1.msra.mxu0 %v353
    %534 = vmatprep.subr.mxu0 %v358
    %535 = vmatpush1.msra.mxu0 %v357
    %536 = vmatprep.subr.mxu0 %v362
    %537 = vmatpush1.msra.mxu0 %v361
    %538 = vmatprep.subr.mxu0 %v366
    %539 = vmatpush1.msra.mxu0 %v365
    %540 = vmatprep.subr.mxu0 %v370
    %541 = vmatpush1.msra.mxu0 %v369
    %542 = vmatprep.subr.mxu0 %v374
    %543 = vmatpush1.msra.mxu0 %v373
    %544 = vmatprep.subr.mxu0 %v378
    %545 = vmatpush1.msra.mxu0 %v377
    %546 = vmatprep.subr.mxu0 %v382
    %547 = vmatpush1.msra.mxu0 %v381
    %548 = vmatprep.subr.mxu0 %v386
    %549 = vmatpush1.msra.mxu0 %v385
    %550 = vmatprep.subr.mxu0 %v390
    %551 = vmatpush1.msra.mxu0 %v389
    %552 = vmatprep.subr.mxu0 %v394
    %553 = vmatpush1.msra.mxu0 %v393
    %554 = vmatprep.subr.mxu0 %v398
    %555 = vmatpush1.msra.mxu0 %v397
    %556 = vmatprep.mubr.f32.mxu0 %v270
    %557 = vmatmul.mubr.f32.gmra.mrb[0].mxu0 %v269
    %v558 = vpop.f32.mrb[0].mxu0
    %v559 = vadd.f32 %v412, %v558
    %v560 = vpop.f32.mrb[0].mxu0
    %v561 = vadd.f32 %v416, %v560
    %562 = vdwg.mxu0
    %v563 = vmax.f32 %v488, 0.0
    %v564 = vmax.f32 %v490, 0.0
    %v565 = vmax.f32 %v559, 0.0
    %v566 = vmax.f32 %v561, 0.0
    %v567 = vld [vmem:[#allocation5] sm:$0xff]
    %v568 = vld [vmem:[#allocation5 + $0x8] sm:$0xff]
    %v569 = vld [vmem:[#allocation5 + $0x10] sm:$0xff]
    %v570 = vld [vmem:[#allocation5 + $0x18] sm:$0xff]
    %v571 = vld [vmem:[#allocation5 + $0x20] sm:$0xff]
    %v572 = vld [vmem:[#allocation5 + $0x28] sm:$0xff]
    %v573 = vld [vmem:[#allocation5 + $0x30] sm:$0xff]
    %v574 = vld [vmem:[#allocation5 + $0x38] sm:$0xff]
    %v575 = vld [vmem:[#allocation5 + $0x40] sm:$0xff]
    %v576 = vld [vmem:[#allocation5 + $0x48] sm:$0xff]
    %v577 = vld [vmem:[#allocation5 + $0x50] sm:$0xff]
    %v578 = vld [vmem:[#allocation5 + $0x58] sm:$0xff]
    %v579 = vld [vmem:[#allocation5 + $0x60] sm:$0xff]
    %v580 = vld [vmem:[#allocation5 + $0x68] sm:$0xff]
    %v581 = vld [vmem:[#allocation5 + $0x70] sm:$0xff]
    %v582 = vld [vmem:[#allocation5 + $0x78] sm:$0xff]
    %v583 = vld [vmem:[#allocation5 + $0x80] sm:$0xff]
    %v584 = vld [vmem:[#allocation5 + $0x88] sm:$0xff]
    %v585 = vld [vmem:[#allocation5 + $0x90] sm:$0xff]
    %v586 = vld [vmem:[#allocation5 + $0x98] sm:$0xff]
    %v587 = vld [vmem:[#allocation5 + $0xa0] sm:$0xff]
    %v588 = vld [vmem:[#allocation5 + $0xa8] sm:$0xff]
    %v589 = vld [vmem:[#allocation5 + $0xb0] sm:$0xff]
    %v590 = vld [vmem:[#allocation5 + $0xb8] sm:$0xff]
    %v591 = vld [vmem:[#allocation5 + $0xc0] sm:$0xff]
    %v592 = vld [vmem:[#allocation5 + $0xc8] sm:$0xff]
    %v593 = vld [vmem:[#allocation5 + $0xd0] sm:$0xff]
    %v594 = vld [vmem:[#allocation5 + $0xd8] sm:$0xff]
    %v595 = vld [vmem:[#allocation5 + $0xe0] sm:$0xff]
    %v596 = vld [vmem:[#allocation5 + $0xe8] sm:$0xff]
    %v597 = vld [vmem:[#allocation5 + $0xf0] sm:$0xff]
    %v598 = vld [vmem:[#allocation5 + $0xf8] sm:$0xff]
    %v599 = vld [vmem:[#allocation5 + $0x100] sm:$0xff]
    %v600 = vld [vmem:[#allocation5 + $0x108] sm:$0xff]
    %v601 = vld [vmem:[#allocation5 + $0x110] sm:$0xff]
    %v602 = vld [vmem:[#allocation5 + $0x118] sm:$0xff]
    %v603 = vld [vmem:[#allocation5 + $0x120] sm:$0xff]
    %v604 = vld [vmem:[#allocation5 + $0x128] sm:$0xff]
    %v605 = vld [vmem:[#allocation5 + $0x130] sm:$0xff]
    %v606 = vld [vmem:[#allocation5 + $0x138] sm:$0xff]
    %v607 = vld [vmem:[#allocation5 + $0x140] sm:$0xff]
    %v608 = vld [vmem:[#allocation5 + $0x148] sm:$0xff]
    %v609 = vld [vmem:[#allocation5 + $0x150] sm:$0xff]
    %v610 = vld [vmem:[#allocation5 + $0x158] sm:$0xff]
    %v611 = vld [vmem:[#allocation5 + $0x160] sm:$0xff]
    %v612 = vld [vmem:[#allocation5 + $0x168] sm:$0xff]
    %v613 = vld [vmem:[#allocation5 + $0x170] sm:$0xff]
    %v614 = vld [vmem:[#allocation5 + $0x178] sm:$0xff]
    %v615 = vld [vmem:[#allocation5 + $0x180] sm:$0xff]
    %v616 = vld [vmem:[#allocation5 + $0x188] sm:$0xff]
    %v617 = vld [vmem:[#allocation5 + $0x190] sm:$0xff]
    %v618 = vld [vmem:[#allocation5 + $0x198] sm:$0xff]
    %v619 = vld [vmem:[#allocation5 + $0x1a0] sm:$0xff]
    %v620 = vld [vmem:[#allocation5 + $0x1a8] sm:$0xff]
    %v621 = vld [vmem:[#allocation5 + $0x1b0] sm:$0xff]
    %v622 = vld [vmem:[#allocation5 + $0x1b8] sm:$0xff]
    %v623 = vld [vmem:[#allocation5 + $0x1c0] sm:$0xff]
    %v624 = vld [vmem:[#allocation5 + $0x1c8] sm:$0xff]
    %v625 = vld [vmem:[#allocation5 + $0x1d0] sm:$0xff]
    %v626 = vld [vmem:[#allocation5 + $0x1d8] sm:$0xff]
    %v627 = vld [vmem:[#allocation5 + $0x1e0] sm:$0xff]
    %v628 = vld [vmem:[#allocation5 + $0x1e8] sm:$0xff]
    %v629 = vld [vmem:[#allocation5 + $0x1f0] sm:$0xff]
    %v630 = vld [vmem:[#allocation5 + $0x1f8] sm:$0xff]
    %v631 = vld [vmem:[#allocation5 + $0x200] sm:$0xff]
    %v632 = vld [vmem:[#allocation5 + $0x208] sm:$0xff]
    %v633 = vld [vmem:[#allocation5 + $0x210] sm:$0xff]
    %v634 = vld [vmem:[#allocation5 + $0x218] sm:$0xff]
    %v635 = vld [vmem:[#allocation5 + $0x220] sm:$0xff]
    %v636 = vld [vmem:[#allocation5 + $0x228] sm:$0xff]
    %v637 = vld [vmem:[#allocation5 + $0x230] sm:$0xff]
    %v638 = vld [vmem:[#allocation5 + $0x238] sm:$0xff]
    %v639 = vld [vmem:[#allocation5 + $0x240] sm:$0xff]
    %v640 = vld [vmem:[#allocation5 + $0x248] sm:$0xff]
    %v641 = vld [vmem:[#allocation5 + $0x250] sm:$0xff]
    %v642 = vld [vmem:[#allocation5 + $0x258] sm:$0xff]
    %v643 = vld [vmem:[#allocation5 + $0x260] sm:$0xff]
    %v644 = vld [vmem:[#allocation5 + $0x268] sm:$0xff]
    %v645 = vld [vmem:[#allocation5 + $0x270] sm:$0xff]
    %v646 = vld [vmem:[#allocation5 + $0x278] sm:$0xff]
    %v647 = vld [vmem:[#allocation5 + $0x280] sm:$0xff]
    %v648 = vld [vmem:[#allocation5 + $0x288] sm:$0xff]
    %v649 = vld [vmem:[#allocation5 + $0x290] sm:$0xff]
    %v650 = vld [vmem:[#allocation5 + $0x298] sm:$0xff]
    %v651 = vld [vmem:[#allocation5 + $0x2a0] sm:$0xff]
    %v652 = vld [vmem:[#allocation5 + $0x2a8] sm:$0xff]
    %v653 = vld [vmem:[#allocation5 + $0x2b0] sm:$0xff]
    %v654 = vld [vmem:[#allocation5 + $0x2b8] sm:$0xff]
    %v655 = vld [vmem:[#allocation5 + $0x2c0] sm:$0xff]
    %v656 = vld [vmem:[#allocation5 + $0x2c8] sm:$0xff]
    %v657 = vld [vmem:[#allocation5 + $0x2d0] sm:$0xff]
    %v658 = vld [vmem:[#allocation5 + $0x2d8] sm:$0xff]
    %v659 = vld [vmem:[#allocation5 + $0x2e0] sm:$0xff]
    %v660 = vld [vmem:[#allocation5 + $0x2e8] sm:$0xff]
    %v661 = vld [vmem:[#allocation5 + $0x2f0] sm:$0xff]
    %v662 = vld [vmem:[#allocation5 + $0x2f8] sm:$0xff]
    %v663 = vld [vmem:[#allocation5 + $0x300] sm:$0xff]
    %v664 = vld [vmem:[#allocation5 + $0x308] sm:$0xff]
    %v665 = vld [vmem:[#allocation5 + $0x310] sm:$0xff]
    %v666 = vld [vmem:[#allocation5 + $0x318] sm:$0xff]
    %v667 = vld [vmem:[#allocation5 + $0x320] sm:$0xff]
    %v668 = vld [vmem:[#allocation5 + $0x328] sm:$0xff]
    %v669 = vld [vmem:[#allocation5 + $0x330] sm:$0xff]
    %v670 = vld [vmem:[#allocation5 + $0x338] sm:$0xff]
    %v671 = vld [vmem:[#allocation5 + $0x340] sm:$0xff]
    %v672 = vld [vmem:[#allocation5 + $0x348] sm:$0xff]
    %v673 = vld [vmem:[#allocation5 + $0x350] sm:$0xff]
    %v674 = vld [vmem:[#allocation5 + $0x358] sm:$0xff]
    %v675 = vld [vmem:[#allocation5 + $0x360] sm:$0xff]
    %v676 = vld [vmem:[#allocation5 + $0x368] sm:$0xff]
    %v677 = vld [vmem:[#allocation5 + $0x370] sm:$0xff]
    %v678 = vld [vmem:[#allocation5 + $0x378] sm:$0xff]
    %v679 = vld [vmem:[#allocation5 + $0x380] sm:$0xff]
    %v680 = vld [vmem:[#allocation5 + $0x388] sm:$0xff]
    %v681 = vld [vmem:[#allocation5 + $0x390] sm:$0xff]
    %v682 = vld [vmem:[#allocation5 + $0x398] sm:$0xff]
    %v683 = vld [vmem:[#allocation5 + $0x3a0] sm:$0xff]
    %v684 = vld [vmem:[#allocation5 + $0x3a8] sm:$0xff]
    %v685 = vld [vmem:[#allocation5 + $0x3b0] sm:$0xff]
    %v686 = vld [vmem:[#allocation5 + $0x3b8] sm:$0xff]
    %v687 = vld [vmem:[#allocation5 + $0x3c0] sm:$0xff]
    %v688 = vld [vmem:[#allocation5 + $0x3c8] sm:$0xff]
    %v689 = vld [vmem:[#allocation5 + $0x3d0] sm:$0xff]
    %v690 = vld [vmem:[#allocation5 + $0x3d8] sm:$0xff]
    %v691 = vld [vmem:[#allocation5 + $0x3e0] sm:$0xff]
    %v692 = vld [vmem:[#allocation5 + $0x3e8] sm:$0xff]
    %v693 = vld [vmem:[#allocation5 + $0x3f0] sm:$0xff]
    %v694 = vld [vmem:[#allocation5 + $0x3f8] sm:$0xff]
    %v695 = vld [vmem:[%s8] sm:$0x3]
    %v697 = vlaneseq
    %v698 = vshrl.u32 %v697, 7
    %v699 = vsub.s32 0, %v698
    %v700 = vrot.slane %v695, %v699
    %v701 = vlaneseq
    %v702 = vshrl.u32 %v701, 7
    %v703 = vsub.s32 1, %v702
    %v704 = vrot.slane %v695, %v703
    %707 = vmatprep.subr.mxu0 %v568
    %708 = vmatpush1.msra.mxu0 %v567
    %709 = vmatprep.subr.mxu0 %v570
    %710 = vmatpush1.msra.mxu0 %v569
    %711 = vmatprep.subr.mxu0 %v572
    %712 = vmatpush1.msra.mxu0 %v571
    %713 = vmatprep.subr.mxu0 %v574
    %714 = vmatpush1.msra.mxu0 %v573
    %715 = vmatprep.subr.mxu0 %v576
    %716 = vmatpush1.msra.mxu0 %v575
    %717 = vmatprep.subr.mxu0 %v578
    %718 = vmatpush1.msra.mxu0 %v577
    %719 = vmatprep.subr.mxu0 %v580
    %720 = vmatpush1.msra.mxu0 %v579
    %721 = vmatprep.subr.mxu0 %v582
    %722 = vmatpush1.msra.mxu0 %v581
    %723 = vmatprep.subr.mxu0 %v584
    %724 = vmatpush1.msra.mxu0 %v583
    %725 = vmatprep.subr.mxu0 %v586
    %726 = vmatpush1.msra.mxu0 %v585
    %727 = vmatprep.subr.mxu0 %v588
    %728 = vmatpush1.msra.mxu0 %v587
    %729 = vmatprep.subr.mxu0 %v590
    %730 = vmatpush1.msra.mxu0 %v589
    %731 = vmatprep.subr.mxu0 %v592
    %732 = vmatpush1.msra.mxu0 %v591
    %733 = vmatprep.subr.mxu0 %v594
    %734 = vmatpush1.msra.mxu0 %v593
    %735 = vmatprep.subr.mxu0 %v596
    %736 = vmatpush1.msra.mxu0 %v595
    %737 = vmatprep.subr.mxu0 %v598
    %738 = vmatpush1.msra.mxu0 %v597
    %739 = vmatprep.subr.mxu0 %v600
    %740 = vmatpush1.msra.mxu0 %v599
    %741 = vmatprep.subr.mxu0 %v602
    %742 = vmatpush1.msra.mxu0 %v601
    %743 = vmatprep.subr.mxu0 %v604
    %744 = vmatpush1.msra.mxu0 %v603
    %745 = vmatprep.subr.mxu0 %v606
    %746 = vmatpush1.msra.mxu0 %v605
    %747 = vmatprep.subr.mxu0 %v608
    %748 = vmatpush1.msra.mxu0 %v607
    %749 = vmatprep.subr.mxu0 %v610
    %750 = vmatpush1.msra.mxu0 %v609
    %751 = vmatprep.subr.mxu0 %v612
    %752 = vmatpush1.msra.mxu0 %v611
    %753 = vmatprep.subr.mxu0 %v614
    %754 = vmatpush1.msra.mxu0 %v613
    %755 = vmatprep.subr.mxu0 %v616
    %756 = vmatpush1.msra.mxu0 %v615
    %757 = vmatprep.subr.mxu0 %v618
    %758 = vmatpush1.msra.mxu0 %v617
    %759 = vmatprep.subr.mxu0 %v620
    %760 = vmatpush1.msra.mxu0 %v619
    %761 = vmatprep.subr.mxu0 %v622
    %762 = vmatpush1.msra.mxu0 %v621
    %763 = vmatprep.subr.mxu0 %v624
    %764 = vmatpush1.msra.mxu0 %v623
    %765 = vmatprep.subr.mxu0 %v626
    %766 = vmatpush1.msra.mxu0 %v625
    %767 = vmatprep.subr.mxu0 %v628
    %768 = vmatpush1.msra.mxu0 %v627
    %769 = vmatprep.subr.mxu0 %v630
    %770 = vmatpush1.msra.mxu0 %v629
    %771 = vmatprep.mubr.f32.mxu0 %v564
    %772 = vmatmul.mubr.f32.gmra.mrb[0].mxu0 %v563
    %v773 = vpop.f32.mrb[0].mxu0
    %v774 = vadd.f32 %v700, %v773
    %v775 = vpop.f32.mrb[0].mxu0
    %v776 = vadd.f32 %v704, %v775
    %777 = vdwg.mxu0
    %778 = vmatprep.subr.mxu0 %v632
    %779 = vmatpush1.msra.mxu0 %v631
    %780 = vmatprep.subr.mxu0 %v634
    %781 = vmatpush1.msra.mxu0 %v633
    %782 = vmatprep.subr.mxu0 %v636
    %783 = vmatpush1.msra.mxu0 %v635
    %784 = vmatprep.subr.mxu0 %v638
    %785 = vmatpush1.msra.mxu0 %v637
    %786 = vmatprep.subr.mxu0 %v640
    %787 = vmatpush1.msra.mxu0 %v639
    %788 = vmatprep.subr.mxu0 %v642
    %789 = vmatpush1.msra.mxu0 %v641
    %790 = vmatprep.subr.mxu0 %v644
    %791 = vmatpush1.msra.mxu0 %v643
    %792 = vmatprep.subr.mxu0 %v646
    %793 = vmatpush1.msra.mxu0 %v645
    %794 = vmatprep.subr.mxu0 %v648
    %795 = vmatpush1.msra.mxu0 %v647
    %796 = vmatprep.subr.mxu0 %v650
    %797 = vmatpush1.msra.mxu0 %v649
    %798 = vmatprep.subr.mxu0 %v652
    %799 = vmatpush1.msra.mxu0 %v651
    %800 = vmatprep.subr.mxu0 %v654
    %801 = vmatpush1.msra.mxu0 %v653
    %802 = vmatprep.subr.mxu0 %v656
    %803 = vmatpush1.msra.mxu0 %v655
    %804 = vmatprep.subr.mxu0 %v658
    %805 = vmatpush1.msra.mxu0 %v657
    %806 = vmatprep.subr.mxu0 %v660
    %807 = vmatpush1.msra.mxu0 %v659
    %808 = vmatprep.subr.mxu0 %v662
    %809 = vmatpush1.msra.mxu0 %v661
    %810 = vmatprep.subr.mxu0 %v664
    %811 = vmatpush1.msra.mxu0 %v663
    %812 = vmatprep.subr.mxu0 %v666
    %813 = vmatpush1.msra.mxu0 %v665
    %814 = vmatprep.subr.mxu0 %v668
    %815 = vmatpush1.msra.mxu0 %v667
    %816 = vmatprep.subr.mxu0 %v670
    %817 = vmatpush1.msra.mxu0 %v669
    %818 = vmatprep.subr.mxu0 %v672
    %819 = vmatpush1.msra.mxu0 %v671
    %820 = vmatprep.subr.mxu0 %v674
    %821 = vmatpush1.msra.mxu0 %v673
    %822 = vmatprep.subr.mxu0 %v676
    %823 = vmatpush1.msra.mxu0 %v675
    %824 = vmatprep.subr.mxu0 %v678
    %825 = vmatpush1.msra.mxu0 %v677
    %826 = vmatprep.subr.mxu0 %v680
    %827 = vmatpush1.msra.mxu0 %v679
    %828 = vmatprep.subr.mxu0 %v682
    %829 = vmatpush1.msra.mxu0 %v681
    %830 = vmatprep.subr.mxu0 %v684
    %831 = vmatpush1.msra.mxu0 %v683
    %832 = vmatprep.subr.mxu0 %v686
    %833 = vmatpush1.msra.mxu0 %v685
    %834 = vmatprep.subr.mxu0 %v688
    %835 = vmatpush1.msra.mxu0 %v687
    %836 = vmatprep.subr.mxu0 %v690
    %837 = vmatpush1.msra.mxu0 %v689
    %838 = vmatprep.subr.mxu0 %v692
    %839 = vmatpush1.msra.mxu0 %v691
    %840 = vmatprep.subr.mxu0 %v694
    %841 = vmatpush1.msra.mxu0 %v693
    %842 = vmatprep.mubr.f32.mxu0 %v566
    %843 = vmatmul.mubr.f32.gmra.mrb[0].mxu0 %v565
    %v844 = vpop.f32.mrb[0].mxu0
    %v845 = vadd.f32 %v774, %v844
    %v846 = vpop.f32.mrb[0].mxu0
    %v847 = vadd.f32 %v776, %v846
    %848 = vdwg.mxu0
    %v849 = vmax.f32 %v845, 0.0
    %v850 = vmax.f32 %v847, 0.0
    %v851 = vld [vmem:[%s9] sm:$0xff]
    %v852 = vld [vmem:[%s9 + $0x8] sm:$0xff]
    %v853 = vld [vmem:[%s9 + $0x10] sm:$0xff]
    %v854 = vld [vmem:[%s9 + $0x18] sm:$0xff]
    %v855 = vld [vmem:[%s9 + $0x20] sm:$0xff]
    %v856 = vld [vmem:[%s9 + $0x28] sm:$0xff]
    %v857 = vld [vmem:[%s9 + $0x30] sm:$0xff]
    %v858 = vld [vmem:[%s9 + $0x38] sm:$0xff]
    %v859 = vld [vmem:[%s9 + $0x40] sm:$0xff]
    %v860 = vld [vmem:[%s9 + $0x48] sm:$0xff]
    %v861 = vld [vmem:[%s9 + $0x50] sm:$0xff]
    %v862 = vld [vmem:[%s9 + $0x58] sm:$0xff]
    %v863 = vld [vmem:[%s9 + $0x60] sm:$0xff]
    %v864 = vld [vmem:[%s9 + $0x68] sm:$0xff]
    %v865 = vld [vmem:[%s9 + $0x70] sm:$0xff]
    %v866 = vld [vmem:[%s9 + $0x78] sm:$0xff]
    %v867 = vld [vmem:[%s9 + $0x80] sm:$0xff]
    %v868 = vld [vmem:[%s9 + $0x88] sm:$0xff]
    %v869 = vld [vmem:[%s9 + $0x90] sm:$0xff]
    %v870 = vld [vmem:[%s9 + $0x98] sm:$0xff]
    %v871 = vld [vmem:[%s9 + $0xa0] sm:$0xff]
    %v872 = vld [vmem:[%s9 + $0xa8] sm:$0xff]
    %v873 = vld [vmem:[%s9 + $0xb0] sm:$0xff]
    %v874 = vld [vmem:[%s9 + $0xb8] sm:$0xff]
    %v875 = vld [vmem:[%s9 + $0xc0] sm:$0xff]
    %v876 = vld [vmem:[%s9 + $0xc8] sm:$0xff]
    %v877 = vld [vmem:[%s9 + $0xd0] sm:$0xff]
    %v878 = vld [vmem:[%s9 + $0xd8] sm:$0xff]
    %v879 = vld [vmem:[%s9 + $0xe0] sm:$0xff]
    %v880 = vld [vmem:[%s9 + $0xe8] sm:$0xff]
    %v881 = vld [vmem:[%s9 + $0xf0] sm:$0xff]
    %v882 = vld [vmem:[%s9 + $0xf8] sm:$0xff]
    %v883 = vld [vmem:[%s10] sm:$0x1]
    %v885 = vlaneseq
    %v886 = vshrl.u32 %v885, 7
    %v887 = vsub.s32 0, %v886
    %v888 = vrot.slane %v883, %v887
    %890 = vmatprep.subr.mxu0 0.0
    %891 = vmatpush1.msra.mxu0 %v851
    %892 = vmatprep.subr.mxu0 0.0
    %893 = vmatpush1.msra.mxu0 %v852
    %894 = vmatprep.subr.mxu0 0.0
    %895 = vmatpush1.msra.mxu0 %v853
    %896 = vmatprep.subr.mxu0 0.0
    %897 = vmatpush1.msra.mxu0 %v854
    %898 = vmatprep.subr.mxu0 0.0
    %899 = vmatpush1.msra.mxu0 %v855
    %900 = vmatprep.subr.mxu0 0.0
    %901 = vmatpush1.msra.mxu0 %v856
    %902 = vmatprep.subr.mxu0 0.0
    %903 = vmatpush1.msra.mxu0 %v857
    %904 = vmatprep.subr.mxu0 0.0
    %905 = vmatpush1.msra.mxu0 %v858
    %906 = vmatprep.subr.mxu0 0.0
    %907 = vmatpush1.msra.mxu0 %v859
    %908 = vmatprep.subr.mxu0 0.0
    %909 = vmatpush1.msra.mxu0 %v860
    %910 = vmatprep.subr.mxu0 0.0
    %911 = vmatpush1.msra.mxu0 %v861
    %912 = vmatprep.subr.mxu0 0.0
    %913 = vmatpush1.msra.mxu0 %v862
    %914 = vmatprep.subr.mxu0 0.0
    %915 = vmatpush1.msra.mxu0 %v863
    %916 = vmatprep.subr.mxu0 0.0
    %917 = vmatpush1.msra.mxu0 %v864
    %918 = vmatprep.subr.mxu0 0.0
    %919 = vmatpush1.msra.mxu0 %v865
    %920 = vmatprep.subr.mxu0 0.0
    %921 = vmatpush1.msra.mxu0 %v866
    %922 = vmatprep.subr.mxu0 0.0
    %923 = vmatpush1.msra.mxu0 %v867
    %924 = vmatprep.subr.mxu0 0.0
    %925 = vmatpush1.msra.mxu0 %v868
    %926 = vmatprep.subr.mxu0 0.0
    %927 = vmatpush1.msra.mxu0 %v869
    %928 = vmatprep.subr.mxu0 0.0
    %929 = vmatpush1.msra.mxu0 %v870
    %930 = vmatprep.subr.mxu0 0.0
    %931 = vmatpush1.msra.mxu0 %v871
    %932 = vmatprep.subr.mxu0 0.0
    %933 = vmatpush1.msra.mxu0 %v872
    %934 = vmatprep.subr.mxu0 0.0
    %935 = vmatpush1.msra.mxu0 %v873
    %936 = vmatprep.subr.mxu0 0.0
    %937 = vmatpush1.msra.mxu0 %v874
    %938 = vmatprep.subr.mxu0 0.0
    %939 = vmatpush1.msra.mxu0 %v875
    %940 = vmatprep.subr.mxu0 0.0
    %941 = vmatpush1.msra.mxu0 %v876
    %942 = vmatprep.subr.mxu0 0.0
    %943 = vmatpush1.msra.mxu0 %v877
    %944 = vmatprep.subr.mxu0 0.0
    %945 = vmatpush1.msra.mxu0 %v878
    %946 = vmatprep.subr.mxu0 0.0
    %947 = vmatpush1.msra.mxu0 %v879
    %948 = vmatprep.subr.mxu0 0.0
    %949 = vmatpush1.msra.mxu0 %v880
    %950 = vmatprep.subr.mxu0 0.0
    %951 = vmatpush1.msra.mxu0 %v881
    %952 = vmatprep.subr.mxu0 0.0
    %953 = vmatpush1.msra.mxu0 %v882
    %954 = vmatprep.mubr.f32.mxu0 %v850
    %955 = vmatmul.mubr.f32.gmra.mrb[0].mxu0 %v849
    %v956 = vpop.f32.mrb[0].mxu0
    %v957 = vadd.f32 %v888, %v956
    %v958 = vpop.f32.mrb[0].mxu0
    %959 = vdwg.mxu0
    %v960 = vmax.f32 %v957, 0.0
    %vm961 = vcmask 523264
    %962 = vst.msk [vmem:[#allocation7] sm:$0xff] %vm961, %v960
    // Predicated region
    $region54: #{mlp_forward.1} parent=1 // pred_check
      _
    $region55: #{mlp_forward.1} parent=1 // pred_check_branch
      %964 = sbr.rel (0) target = $region57
    $region56: #{mlp_forward.1} parent=1 // pred_region
      %s966 = ssub.s32 128, 128
      %967 = vsyncadd [#allocation4], %s966
      %s969 = sshll.u32 [#allocation7], 4
      %s970 = int_to_ptr.vmem [resolvable:$true] %s969
      %972 = dma.vmem_to_hbm [thread:$0]  %s970, 128, %s11, [#allocation4]
    $region57: #{mlp_forward.1} parent=1 // pred_fallthru
      _
    // Predicated region
    $region58: #{mlp_forward.1} parent=1 // pred_check
      _
    $region59: #{mlp_forward.1} parent=1 // pred_check_branch
      %974 = sbr.rel (0) target = $region61
    $region60: #{mlp_forward.1} parent=1 // pred_region
      %975 = dma.done [#allocation4], 128
    $region61: #{mlp_forward.1} parent=1 // pred_fallthru
      _
    %976 = vsyncpa [#allocation3], 1
    %977 = vsyncpa [#allocation6], 1
    %978 = vsyncpa [#allocation4], 1

</llo_original>
